<compile_context>
chip_gen: v5e
topology: v5e:2x2
jax: 0.10.0
libtpu: 0.0.40
codegen_flags: <defaults>
</compile_context>

<pallas_src>
import math
from functools import partial

import jax
import jax.numpy as jnp
from jax import lax
from jax.experimental import pallas as pl
from jax.experimental.pallas import tpu as pltpu


def _round_up(x, m):
    return (x + m - 1) // m * m


def _const_spec(shape):
    """BlockSpec for a grid-invariant operand; single-buffered when supported."""
    index_map = lambda i: (0,) * len(shape)
    try:
        return pl.BlockSpec(shape, index_map, pipeline_mode=pl.Buffered(1))
    except TypeError:  # older jax without the pipeline_mode kwarg
        return pl.BlockSpec(shape, index_map)


def _patch_merging_kernel(xh0_ref, xh1_ref, w0_ref, w1_ref, b_ref, o_ref, *, eps, inv_c4):
    # xh0_ref : (tbh, Wo, 2C)   h-even rows, channels = [x0 | x2]  (w-even | w-odd)
    # xh1_ref : (tbh, Wo, 2C)   h-odd  rows, channels = [x1 | x3]
    # w0_ref  : (2C, CoutP)     gamma-folded reduction weight rows for [x0 | x2]
    # w1_ref  : (2C, CoutP)     gamma-folded reduction weight rows for [x1 | x3]
    # b_ref   : (1, CoutP)      beta @ W.T  (f32)
    # o_ref   : (tbh*Wo, CoutP)
    tbh, wo, c2 = xh0_ref.shape
    rows = tbh * wo
    x0 = xh0_ref[...].astype(jnp.float32).reshape(rows, c2)
    x1 = xh1_ref[...].astype(jnp.float32).reshape(rows, c2)

    # LayerNorm statistics over the full 4C row, accumulated over the two parity halves.
    mu = (jnp.sum(x0, axis=-1, keepdims=True)
          + jnp.sum(x1, axis=-1, keepdims=True)) * inv_c4
    c0 = x0 - mu
    c1 = x1 - mu
    var = (jnp.sum(c0 * c0, axis=-1, keepdims=True)
           + jnp.sum(c1 * c1, axis=-1, keepdims=True)) * inv_c4
    inv = lax.rsqrt(var + eps)                      # EUP slot, essentially free

    y0 = (c0 * inv).astype(w0_ref.dtype)
    y1 = (c1 * inv).astype(w1_ref.dtype)
    acc = jnp.dot(y0, w0_ref[...], preferred_element_type=jnp.float32)
    acc = acc + jnp.dot(y1, w1_ref[...], preferred_element_type=jnp.float32)
    acc = acc + b_ref[...]                          # folded LayerNorm beta
    o_ref[...] = acc.astype(o_ref.dtype)


def patch_merging2d_forward(x, gamma, beta, w, *, eps=1e-5, use_bf16=True, out_dtype=None):
    """PatchMerging2D forward (channels-last).

    x     : (B, H, W, C)
    gamma : (4C,)   LayerNorm weight
    beta  : (4C,)   LayerNorm bias
    w     : (Cout, 4C)  reduction weight in PyTorch (out, in) layout, no bias
    returns (B, ceil(H/2), ceil(W/2), Cout)
    """
    B, H, W, C = x.shape
    Cout, C4 = w.shape
    assert C4 == 4 * C, "reduction weight must have 4*dim input features"
    out_dtype = jnp.dtype(x.dtype if out_dtype is None else out_dtype)

    # Pad H, W to even (matches F.pad in the PyTorch module). Only copies when odd.
    if H % 2 or W % 2:
        x = jnp.pad(x, ((0, 0), (0, H % 2), (0, W % 2), (0, 0)))
    Ho, Wo = x.shape[1] // 2, x.shape[2] // 2
    C2 = 2 * C
    M_bh = B * Ho                       # one grid row per (batch, output-row) pair
    M = M_bh * Wo                       # total output pixels

    # Free reshape (row-major, no transpose, no HBM copy):
    #   (B, Ho, 2, Wo, 2, C) -> (B*Ho, 2, Wo, 2C)
    # For a fixed h-parity, the last dim is [w-even channels | w-odd channels].
    x4 = x.reshape(M_bh, 2, Wo, C2)

    # ---- weight prep (tiny: 4C x Cout), done once per call -------------------------
    # Fold the LayerNorm affine into the projection:
    #   LN(x) @ W.T = ((x - mu) * rsqrt(var + eps)) @ (diag(gamma) @ W.T) + beta @ W.T
    w_dtype = jnp.bfloat16 if use_bf16 else jnp.dtype(w.dtype)
    CoutP = _round_up(Cout, 128)        # lane-dense output
    wt = gamma.astype(jnp.float32)[:, None] * w.T.astype(jnp.float32)     # (4C, Cout)
    bias = beta.astype(jnp.float32) @ w.T.astype(jnp.float32)             # (Cout,)
    # Split weight rows to match the in-kernel channel order of each parity ref:
    #   h-even ref = [x0 | x2], h-odd ref = [x1 | x3]   (x0..x3 as in the PyTorch concat)
    w_h0 = jnp.concatenate([wt[0:C], wt[2 * C:3 * C]], axis=0)            # (2C, Cout)
    w_h1 = jnp.concatenate([wt[C:2 * C], wt[3 * C:4 * C]], axis=0)        # (2C, Cout)
    if CoutP != Cout:
        pad = ((0, 0), (0, CoutP - Cout))
        w_h0 = jnp.pad(w_h0, pad)
        w_h1 = jnp.pad(w_h1, pad)
        bias = jnp.pad(bias, (0, CoutP - Cout))
    w_h0 = w_h0.astype(w_dtype)
    w_h1 = w_h1.astype(w_dtype)
    bias2d = bias.reshape(1, CoutP)                                       # stays f32

    # ---- tile sizing against a generation-aware VMEM budget ------------------------
    bpe_in = jnp.dtype(x.dtype).itemsize
    bpe_out = out_dtype.itemsize
    bpe_w = jnp.dtype(w_dtype).itemsize
    try:
        phys_vmem = int(pltpu.get_tpu_info().vmem_capacity_bytes)
    except Exception:
        phys_vmem = 128 * 1024 * 1024
    # Headroom: <=48 MiB on v7x (64 MiB/TC), 64 MiB on v5e/v6e (128 MiB/TC).
    vmem_cap = 48 * 1024 * 1024 if phys_vmem <= 64 * 1024 * 1024 else 64 * 1024 * 1024

    w_resident = 2 * C2 * CoutP * bpe_w + CoutP * 4     # single-buffered weights + bias
    per_pixel = (2 * 2 * C2 * bpe_in                    # two parity refs, double-buffered
                 + 2 * CoutP * bpe_out                  # output block, double-buffered
                 + 5 * C2 * 4                           # in-kernel f32 LN temporaries
                 + CoutP * 4)                           # f32 accumulator
    pool = min(24 * 1024 * 1024, vmem_cap // 2) - w_resident
    rows_budget = max(Wo, pool // per_pixel) if pool > 0 else Wo
    tbh = max(1, min(rows_budget // Wo,                 # fits the VMEM pool
                     max(1, 2048 // Wo),                # ~2K pixels/step saturates HBM roofline
                     M_bh))
    if M_bh >= 2:                                       # >=2 steps -> both v7x TCs get work
        tbh = min(tbh, pl.cdiv(M_bh, 2))
    if tbh < M_bh and (tbh * Wo) % 8:                   # output block rows must be 8-aligned
        tbh = min(max(8, (tbh // 8) * 8), M_bh)

    est = w_resident + tbh * Wo * per_pixel + (2 << 20)
    vmem_limit = int(min(max(vmem_cap, est), int(phys_vmem * 0.9)))

    grid = (pl.cdiv(M_bh, tbh),)

    out2d = pl.pallas_call(
        partial(_patch_merging_kernel, eps=float(eps), inv_c4=1.0 / C4),
        out_shape=jax.ShapeDtypeStruct((M, CoutP), out_dtype),
        grid_spec=pltpu.PrefetchScalarGridSpec(
            num_scalar_prefetch=0,
            grid=grid,
            in_specs=[
                # h-even rows of the tile's output pixels: kernel sees (tbh, Wo, 2C)
                pl.BlockSpec((tbh, None, Wo, C2), lambda i: (i, 0, 0, 0)),
                # h-odd rows:
                pl.BlockSpec((tbh, None, Wo, C2), lambda i: (i, 1, 0, 0)),
                _const_spec((C2, CoutP)),
                _const_spec((C2, CoutP)),
                _const_spec((1, CoutP)),
            ],
            out_specs=pl.BlockSpec((tbh * Wo, CoutP), lambda i: (i, 0)),
        ),
        compiler_params=pltpu.CompilerParams(
            dimension_semantics=("parallel",),
            vmem_limit_bytes=vmem_limit,
        ),
    )(x4, x4, w_h0, w_h1, bias2d)

    out = out2d.reshape(B, Ho, Wo, CoutP)
    if CoutP != Cout:
        out = out[..., :Cout]       # skipped entirely when Cout is already lane-aligned
    return out


def patch_merging2d_reference(x, gamma, beta, w, eps=1e-5):
    """Pure-JAX reference mirroring the PyTorch forward (channel_first=False)."""
    B, H, W, C = x.shape
    if H % 2 or W % 2:
        x = jnp.pad(x, ((0, 0), (0, H % 2), (0, W % 2), (0, 0)))
    x0 = x[:, 0::2, 0::2, :]
    x1 = x[:, 1::2, 0::2, :]
    x2 = x[:, 0::2, 1::2, :]
    x3 = x[:, 1::2, 1::2, :]
    xm = jnp.concatenate([x0, x1, x2, x3], axis=-1).astype(jnp.float32)
    mu = xm.mean(-1, keepdims=True)
    var = ((xm - mu) ** 2).mean(-1, keepdims=True)
    xn = (xm - mu) / jnp.sqrt(var + eps) * gamma + beta
    return jnp.einsum("bhwc,oc->bhwo", xn, w.astype(jnp.float32))


if __name__ == "__main__":
    key = jax.random.PRNGKey(0)
    k_x, k_g, k_b, k_w, k_x2 = jax.random.split(key, 5)

    # PatchMerging2D(dim=4), out_dim=-1 -> Cout = 2*dim = 8, channel_first=False
    # NOTE: benchmark at production VMamba sizes (C=96/192/384); these shapes are a
    # small correctness check only.
    B, H, W, dim = 2, 16, 16, 4
    C4, Cout = 4 * dim, 2 * dim

    x = jax.random.normal(k_x, (B, H, W, dim), dtype=jnp.float32)
    gamma = 1.0 + 0.1 * jax.random.normal(k_g, (C4,), dtype=jnp.float32)
    beta = 0.1 * jax.random.normal(k_b, (C4,), dtype=jnp.float32)
    bound = 1.0 / math.sqrt(C4)
    w = jax.random.uniform(k_w, (Cout, C4), jnp.float32, -bound, bound)

    ref = patch_merging2d_reference(x, gamma, beta, w)

    # Default path: bf16 MXU weights, f32 LN stats / accumulation (looser tolerance).
    out = jax.block_until_ready(patch_merging2d_forward(x, gamma, beta, w))
    assert out.shape == (B, H // 2, W // 2, Cout)
    assert jnp.max(jnp.abs(out - ref)) < 5e-2, "bf16-MXU path mismatch vs reference"

    # Full-f32 path: tight tolerance.
    out_f32 = jax.block_until_ready(
        patch_merging2d_forward(x, gamma, beta, w, use_bf16=False))
    assert jnp.max(jnp.abs(out_f32 - ref)) < 1e-4, "f32 path mismatch vs reference"

    # Odd spatial size -> exercises the even-pad and the ragged final grid tile.
    x_odd = jax.random.normal(k_x2, (1, 9, 16, dim), dtype=jnp.float32)
    ref_odd = patch_merging2d_reference(x_odd, gamma, beta, w)
    out_odd = jax.block_until_ready(
        patch_merging2d_forward(x_odd, gamma, beta, w, use_bf16=False))
    assert out_odd.shape == (1, 5, 8, Cout)
    assert jnp.max(jnp.abs(out_odd - ref_odd)) < 1e-4, "odd-size / ragged-tile mismatch"

    print("KERNEL_OK")
</pallas_src>

<mosaic_0001>
module attributes {stable_mosaic.version = 11 : i64} {
  func.func @_patch_merging_kernel(%arg0: i32, %arg1: memref<8x1x8x8xf32, #tpu.memory_space<vmem>>, %arg2: memref<8x1x8x8xf32, #tpu.memory_space<vmem>>, %arg3: memref<8x128xbf16, #tpu.memory_space<vmem>>, %arg4: memref<8x128xbf16, #tpu.memory_space<vmem>>, %arg5: memref<1x128xf32, #tpu.memory_space<vmem>>, %arg6: memref<64x128xf32, #tpu.memory_space<vmem>>) attributes {dimension_semantics = [#tpu.dimension_semantics<parallel>], iteration_bounds = array<i64: 2>, scalar_prefetch = 0 : i64, scratch_operands = 0 : i64, tpu.core_type = #tpu.core_type<tc>, window_params = [{transform_indices = @transform_0, window_bounds = array<i64: 8, 1, 8, 8>}, {transform_indices = @transform_1, window_bounds = array<i64: 8, 1, 8, 8>}, {pipeline_mode = #tpu.pipeline_mode<synchronous>, transform_indices = @transform_2, window_bounds = array<i64: 8, 128>}, {pipeline_mode = #tpu.pipeline_mode<synchronous>, transform_indices = @transform_3, window_bounds = array<i64: 8, 128>}, {pipeline_mode = #tpu.pipeline_mode<synchronous>, transform_indices = @transform_4, window_bounds = array<i64: 1, 128>}, {transform_indices = @transform_5, window_bounds = array<i64: 64, 128>}]} {
    %c0 = arith.constant 0 : index
    %c0_0 = arith.constant 0 : index
    %c0_1 = arith.constant 0 : index
    %c0_2 = arith.constant 0 : index
    %0 = vector.load %arg1[%c0, %c0_0, %c0_1, %c0_2] : memref<8x1x8x8xf32, #tpu.memory_space<vmem>>, vector<8x1x8x8xf32>
    %1 = vector.shape_cast %0 : vector<8x1x8x8xf32> to vector<8x8x8xf32>
    %2 = vector.shape_cast %1 : vector<8x8x8xf32> to vector<64x8xf32>
    %c0_3 = arith.constant 0 : index
    %c0_4 = arith.constant 0 : index
    %c0_5 = arith.constant 0 : index
    %c0_6 = arith.constant 0 : index
    %3 = vector.load %arg2[%c0_3, %c0_4, %c0_5, %c0_6] : memref<8x1x8x8xf32, #tpu.memory_space<vmem>>, vector<8x1x8x8xf32>
    %4 = vector.shape_cast %3 : vector<8x1x8x8xf32> to vector<8x8x8xf32>
    %5 = vector.shape_cast %4 : vector<8x8x8xf32> to vector<64x8xf32>
    %cst = arith.constant dense<0.000000e+00> : vector<64xf32>
    %6 = vector.multi_reduction <add>, %2, %cst [1] : vector<64x8xf32> to vector<64xf32>
    %7 = vector.shape_cast %6 : vector<64xf32> to vector<64x1xf32>
    %cst_7 = arith.constant dense<0.000000e+00> : vector<64xf32>
    %8 = vector.multi_reduction <add>, %5, %cst_7 [1] : vector<64x8xf32> to vector<64xf32>
    %9 = vector.shape_cast %8 : vector<64xf32> to vector<64x1xf32>
    %10 = arith.addf %7, %9 : vector<64x1xf32>
    %cst_8 = arith.constant 6.250000e-02 : f32
    %11 = vector.broadcast %cst_8 : f32 to vector<64x1xf32>
    %12 = arith.mulf %10, %11 : vector<64x1xf32>
    %13 = vector.broadcast %12 : vector<64x1xf32> to vector<64x8xf32>
    %14 = arith.subf %2, %13 : vector<64x8xf32>
    %15 = vector.broadcast %12 : vector<64x1xf32> to vector<64x8xf32>
    %16 = arith.subf %5, %15 : vector<64x8xf32>
    %17 = arith.mulf %14, %14 : vector<64x8xf32>
    %cst_9 = arith.constant dense<0.000000e+00> : vector<64xf32>
    %18 = vector.multi_reduction <add>, %17, %cst_9 [1] : vector<64x8xf32> to vector<64xf32>
    %19 = vector.shape_cast %18 : vector<64xf32> to vector<64x1xf32>
    %20 = arith.mulf %16, %16 : vector<64x8xf32>
    %cst_10 = arith.constant dense<0.000000e+00> : vector<64xf32>
    %21 = vector.multi_reduction <add>, %20, %cst_10 [1] : vector<64x8xf32> to vector<64xf32>
    %22 = vector.shape_cast %21 : vector<64xf32> to vector<64x1xf32>
    %23 = arith.addf %19, %22 : vector<64x1xf32>
    %cst_11 = arith.constant 6.250000e-02 : f32
    %24 = vector.broadcast %cst_11 : f32 to vector<64x1xf32>
    %25 = arith.mulf %23, %24 : vector<64x1xf32>
    %cst_12 = arith.constant 9.99999974E-6 : f32
    %26 = vector.broadcast %cst_12 : f32 to vector<64x1xf32>
    %27 = arith.addf %25, %26 : vector<64x1xf32>
    %28 = math.rsqrt %27 : vector<64x1xf32>
    %29 = vector.broadcast %28 : vector<64x1xf32> to vector<64x8xf32>
    %30 = arith.mulf %14, %29 : vector<64x8xf32>
    %31 = arith.truncf %30 : vector<64x8xf32> to vector<64x8xbf16>
    %32 = vector.broadcast %28 : vector<64x1xf32> to vector<64x8xf32>
    %33 = arith.mulf %16, %32 : vector<64x8xf32>
    %34 = arith.truncf %33 : vector<64x8xf32> to vector<64x8xbf16>
    %c0_13 = arith.constant 0 : index
    %c0_14 = arith.constant 0 : index
    %35 = vector.load %arg3[%c0_13, %c0_14] : memref<8x128xbf16, #tpu.memory_space<vmem>>, vector<8x128xbf16>
    %cst_15 = arith.constant dense<0.000000e+00> : vector<64x128xf32>
    %36 = tpu.matmul %31, %35, %cst_15 {dimension_numbers = #tpu.dot_dimension_numbers<[1], [0], [0], [1], [0, 0, 1, 1], [], []>} : vector<64x8xbf16>, vector<8x128xbf16>, vector<64x128xf32> -> vector<64x128xf32>
    %c0_16 = arith.constant 0 : index
    %c0_17 = arith.constant 0 : index
    %37 = vector.load %arg4[%c0_16, %c0_17] : memref<8x128xbf16, #tpu.memory_space<vmem>>, vector<8x128xbf16>
    %cst_18 = arith.constant dense<0.000000e+00> : vector<64x128xf32>
    %38 = tpu.matmul %34, %37, %cst_18 {dimension_numbers = #tpu.dot_dimension_numbers<[1], [0], [0], [1], [0, 0, 1, 1], [], []>} : vector<64x8xbf16>, vector<8x128xbf16>, vector<64x128xf32> -> vector<64x128xf32>
    %39 = arith.addf %36, %38 : vector<64x128xf32>
    %c0_19 = arith.constant 0 : index
    %c0_20 = arith.constant 0 : index
    %40 = vector.load %arg5[%c0_19, %c0_20] : memref<1x128xf32, #tpu.memory_space<vmem>>, vector<1x128xf32>
    %41 = vector.broadcast %40 : vector<1x128xf32> to vector<64x128xf32>
    %42 = arith.addf %39, %41 : vector<64x128xf32>
    %c0_21 = arith.constant 0 : index
    %c0_22 = arith.constant 0 : index
    %43 = vector.load %arg6[%c0_21, %c0_22] : memref<64x128xf32, #tpu.memory_space<vmem>>, vector<64x128xf32>
    tpu.vector_store %arg6[%c0_21, %c0_22], %42 {strides = array<i32>} : memref<64x128xf32, #tpu.memory_space<vmem>>, vector<64x128xf32>,
    return
  }
  func.func @transform_0(%arg0: i32) -> (i32, i32, i32, i32) {
    %c0_i32 = arith.constant 0 : i32
    %c0_i32_0 = arith.constant 0 : i32
    %c0_i32_1 = arith.constant 0 : i32
    %c0_i32_2 = arith.constant 0 : i32
    return %arg0, %c0_i32, %c0_i32_0, %c0_i32_1 : i32, i32, i32, i32
  }
  func.func @transform_1(%arg0: i32) -> (i32, i32, i32, i32) {
    %c1_i32 = arith.constant 1 : i32
    %c0_i32 = arith.constant 0 : i32
    %c0_i32_0 = arith.constant 0 : i32
    %c0_i32_1 = arith.constant 0 : i32
    return %arg0, %c1_i32, %c0_i32, %c0_i32_0 : i32, i32, i32, i32
  }
  func.func @transform_2(%arg0: i32) -> (i32, i32) {
    %c0_i32 = arith.constant 0 : i32
    %c0_i32_0 = arith.constant 0 : i32
    %c0_i32_1 = arith.constant 0 : i32
    return %c0_i32, %c0_i32_0 : i32, i32
  }
  func.func @transform_3(%arg0: i32) -> (i32, i32) {
    %c0_i32 = arith.constant 0 : i32
    %c0_i32_0 = arith.constant 0 : i32
    %c0_i32_1 = arith.constant 0 : i32
    return %c0_i32, %c0_i32_0 : i32, i32
  }
  func.func @transform_4(%arg0: i32) -> (i32, i32) {
    %c0_i32 = arith.constant 0 : i32
    %c0_i32_0 = arith.constant 0 : i32
    %c0_i32_1 = arith.constant 0 : i32
    return %c0_i32, %c0_i32_0 : i32, i32
  }
  func.func @transform_5(%arg0: i32) -> (i32, i32) {
    %c0_i32 = arith.constant 0 : i32
    %c0_i32_0 = arith.constant 0 : i32
    return %arg0, %c0_i32 : i32, i32
  }
}

</mosaic_0001>

<llo_original>
// kernel: tpu_custom_call.1
$region0: #{tpu_custom_call.1}
  #allocation0 [shape = 'u32[]', space=smem, size = 0x4, offset = 0x4, fixed_abs, tag = 'smem constant byte address 0x4 - core index']
  #allocation1 [shape = 'u32[72,128]{1,0:T(1,128)}', space=vmem, size = 0x9000, scoped, tag = 'internal scratch']
  %s0 = inlined_call_operand.vmem [shape: f32[16,2,8,8], index: 0, kind: input, shape index: {}]
  %s1 = inlined_call_operand.vmem [shape: f32[16,2,8,8], index: 1, kind: input, shape index: {}]
  %s2 = inlined_call_operand.vmem [shape: bf16[8,128], index: 2, kind: input, shape index: {}]
  %s3 = inlined_call_operand.vmem [shape: bf16[8,128], index: 3, kind: input, shape index: {}]
  %s4 = inlined_call_operand.vmem [shape: f32[1,128], index: 4, kind: input, shape index: {}]
  %s5 = inlined_call_operand.hbm [shape: f32[128,128], index: 5, kind: output, shape index: {}]
  %s6 = sld [smem:[#allocation0]]
  $region129: #{tpu_custom_call.1} parent=0
    _
  %s8 = ssub.s32 1, %s6
  %s9 = scalar_select 0, %s8, %s6
  $region1: #{tpu_custom_call.1} parent=0
    #allocation2 [shape = 'u8[65536]{0}', space=vmem, size = 0x10000, scoped, tag = 'input window, operand 0']
    #allocation3 [shape = 'u8[65536]{0}', space=vmem, size = 0x10000, scoped, tag = 'input window, operand 1']
    #allocation4 [shape = 'u8[65536]{0}', space=vmem, size = 0x10000, scoped, tag = 'output window, operand 0']
    #allocation5 [shape = 's32[2]{0}', space=sflag, size = 0x8, scoped, tag = 'scoped memory for tpu_custom_call.1']
    %10 = vsyncpa [#allocation5], 0
    %s11 = scalar_lea.sflag [#allocation5], 1
    %12 = vsyncpa %s11, 0
    loop: start=0, step=1, limit=4
    $region2: #{tpu_custom_call.1} parent=1 // loop_pre_header
      _
    $region3: #{tpu_custom_call.1} parent=1 // loop_header
      %s14 = sphi 0, %s18
      %p15 = scmp.ge.s32.totalorder %s14, 4
      %s24 = sphi 0, %s26
      %s27 = sphi 0, %s24
      %s28 = sphi 0, %s27
      %s44 = sphi 0, %s28
      %s50 = sphi 0, %s52
      %s53 = sphi 0, %s50
      %s54 = sphi 0, %s53
      %s70 = sphi 0, %s54
      %s74 = sphi 0, %s74
      %s76 = sphi 0, %s74
      %s77 = sphi 0, %s76
      %s91 = sphi 0, %s77
      %s95 = sphi 0, %s95
      %s97 = sphi 0, %s95
      %s98 = sphi 0, %s97
      %s112 = sphi 0, %s98
      %s116 = sphi 0, %s116
      %s118 = sphi 0, %s116
      %s119 = sphi 0, %s118
      %s133 = sphi 0, %s119
      %s139 = sphi 0, %s141
      %s142 = sphi 0, %s139
      %s143 = sphi 0, %s142
      %s159 = sphi 0, %s143
    $region4: #{tpu_custom_call.1} parent=1 // loop_header_branch
      %17 = sbr.rel (%p15) target = $region8
    $region5: #{tpu_custom_call.1} parent=1 // loop_body
      %s19 = ssub.s32 %s14, 1
      %s20 = ssub.s32 %s14, 2
      %s21 = sadd.s32 %s14, 1
      %s22 = ssub.s32 %s14, %s21
      %p23 = scmp.eq.s32.totalorder %s22, 0
      %s25 = sadd.s32 %s24, 1
      %s26 = scalar_select %p23, %s24, %s25
      %p29 = pneg %p23
      %p30 = scmp.eq.s32.totalorder %s14, 1
      %p31 = por %p29, %p30
      %p32 = scmp.ne.s32.totalorder %s24, %s27
      %p33 = scmp.eq.s32.totalorder %s14, 0
      %p34 = por %p32, %p33
      %p35 = scmp.ne.s32.totalorder %s24, %s27
      %p36 = scmp.eq.s32.totalorder %s19, 1
      %p37 = por %p35, %p36
      %p38 = scmp.ne.s32.totalorder %s27, %s28
      %p39 = scmp.eq.s32.totalorder %s19, 0
      %p40 = por %p38, %p39
      %p41 = scmp.ne.s32.totalorder %s27, %s28
      %p42 = scmp.eq.s32.totalorder %s20, 1
      %p43 = por %p41, %p42
      %p45 = scmp.ne.s32.totalorder %s28, %s44
      %p46 = scmp.eq.s32.totalorder %s20, 0
      %p47 = por %p45, %p46
      %s48 = ssub.s32 %s14, %s21
      %p49 = scmp.eq.s32.totalorder %s48, 0
      %s51 = sadd.s32 %s50, 1
      %s52 = scalar_select %p49, %s50, %s51
      %p55 = pneg %p49
      %p56 = scmp.eq.s32.totalorder %s14, 1
      %p57 = por %p55, %p56
      %p58 = scmp.ne.s32.totalorder %s50, %s53
      %p59 = scmp.eq.s32.totalorder %s14, 0
      %p60 = por %p58, %p59
      %p61 = scmp.ne.s32.totalorder %s50, %s53
      %p62 = scmp.eq.s32.totalorder %s19, 1
      %p63 = por %p61, %p62
      %p64 = scmp.ne.s32.totalorder %s53, %s54
      %p65 = scmp.eq.s32.totalorder %s19, 0
      %p66 = por %p64, %p65
      %p67 = scmp.ne.s32.totalorder %s53, %s54
      %p68 = scmp.eq.s32.totalorder %s20, 1
      %p69 = por %p67, %p68
      %p71 = scmp.ne.s32.totalorder %s54, %s70
      %p72 = scmp.eq.s32.totalorder %s20, 0
      %p73 = por %p71, %p72
      %s75 = sadd.s32 %s74, 1
      %p78 = scmp.eq.s32.totalorder %s14, 1
      %p79 = scmp.ne.s32.totalorder %s74, %s76
      %p80 = scmp.eq.s32.totalorder %s14, 0
      %p81 = por %p79, %p80
      %p82 = scmp.ne.s32.totalorder %s74, %s76
      %p83 = scmp.eq.s32.totalorder %s19, 1
      %p84 = por %p82, %p83
      %p85 = scmp.ne.s32.totalorder %s76, %s77
      %p86 = scmp.eq.s32.totalorder %s19, 0
      %p87 = por %p85, %p86
      %p88 = scmp.ne.s32.totalorder %s76, %s77
      %p89 = scmp.eq.s32.totalorder %s20, 1
      %p90 = por %p88, %p89
      %p92 = scmp.ne.s32.totalorder %s77, %s91
      %p93 = scmp.eq.s32.totalorder %s20, 0
      %p94 = por %p92, %p93
      %s96 = sadd.s32 %s95, 1
      %p99 = scmp.eq.s32.totalorder %s14, 1
      %p100 = scmp.ne.s32.totalorder %s95, %s97
      %p101 = scmp.eq.s32.totalorder %s14, 0
      %p102 = por %p100, %p101
      %p103 = scmp.ne.s32.totalorder %s95, %s97
      %p104 = scmp.eq.s32.totalorder %s19, 1
      %p105 = por %p103, %p104
      %p106 = scmp.ne.s32.totalorder %s97, %s98
      %p107 = scmp.eq.s32.totalorder %s19, 0
      %p108 = por %p106, %p107
      %p109 = scmp.ne.s32.totalorder %s97, %s98
      %p110 = scmp.eq.s32.totalorder %s20, 1
      %p111 = por %p109, %p110
      %p113 = scmp.ne.s32.totalorder %s98, %s112
      %p114 = scmp.eq.s32.totalorder %s20, 0
      %p115 = por %p113, %p114
      %s117 = sadd.s32 %s116, 1
      %p120 = scmp.eq.s32.totalorder %s14, 1
      %p121 = scmp.ne.s32.totalorder %s116, %s118
      %p122 = scmp.eq.s32.totalorder %s14, 0
      %p123 = por %p121, %p122
      %p124 = scmp.ne.s32.totalorder %s116, %s118
      %p125 = scmp.eq.s32.totalorder %s19, 1
      %p126 = por %p124, %p125
      %p127 = scmp.ne.s32.totalorder %s118, %s119
      %p128 = scmp.eq.s32.totalorder %s19, 0
      %p129 = por %p127, %p128
      %p130 = scmp.ne.s32.totalorder %s118, %s119
      %p131 = scmp.eq.s32.totalorder %s20, 1
      %p132 = por %p130, %p131
      %p134 = scmp.ne.s32.totalorder %s119, %s133
      %p135 = scmp.eq.s32.totalorder %s20, 0
      %p136 = por %p134, %p135
      %s137 = ssub.s32 %s14, %s21
      %p138 = scmp.eq.s32.totalorder %s137, 0
      %s140 = sadd.s32 %s139, 1
      %s141 = scalar_select %p138, %s139, %s140
      %p144 = pneg %p138
      %p145 = scmp.eq.s32.totalorder %s14, 1
      %p146 = por %p144, %p145
      %p147 = scmp.ne.s32.totalorder %s139, %s142
      %p148 = scmp.eq.s32.totalorder %s14, 0
      %p149 = por %p147, %p148
      %p150 = scmp.ne.s32.totalorder %s139, %s142
      %p151 = scmp.eq.s32.totalorder %s19, 1
      %p152 = por %p150, %p151
      %p153 = scmp.ne.s32.totalorder %s142, %s143
      %p154 = scmp.eq.s32.totalorder %s19, 0
      %p155 = por %p153, %p154
      %p156 = scmp.ne.s32.totalorder %s142, %s143
      %p157 = scmp.eq.s32.totalorder %s20, 1
      %p158 = por %p156, %p157
      %p160 = scmp.ne.s32.totalorder %s143, %s159
      %p161 = scmp.eq.s32.totalorder %s20, 0
      %p162 = por %p160, %p161
      %p163 = scmp.le.s32.totalorder 1, %s14
      %p164 = scmp.lt.s32.totalorder %s14, 3
      %p165 = pnand %p163, %p164
      %p166 = pneg %p165
      // Predicated region
      $region9: #{tpu_custom_call.1} parent=5 // pred_check
        _
      $region10: #{tpu_custom_call.1} parent=5 // pred_check_branch
        %168 = sbr.rel (%p165) target = $region12
      $region11: #{tpu_custom_call.1} parent=5 // pred_region
        %s169 = ssub.s32 %s14, 1
        // Predicated region
        $region13: #{tpu_custom_call.1} parent=11 // pred_check
          %p170 = pneg %p87
        $region14: #{tpu_custom_call.1} parent=11 // pred_check_branch
          %172 = sbr.rel (%p170) target = $region16
        $region15: #{tpu_custom_call.1} parent=11 // pred_region
          _
        $region16: #{tpu_custom_call.1} parent=11 // pred_fallthru
          _
        // Predicated region
        $region17: #{tpu_custom_call.1} parent=11 // pred_check
          %p173 = pneg %p108
        $region18: #{tpu_custom_call.1} parent=11 // pred_check_branch
          %175 = sbr.rel (%p173) target = $region20
        $region19: #{tpu_custom_call.1} parent=11 // pred_region
          _
        $region20: #{tpu_custom_call.1} parent=11 // pred_fallthru
          _
        // Predicated region
        $region21: #{tpu_custom_call.1} parent=11 // pred_check
          %p176 = pneg %p129
        $region22: #{tpu_custom_call.1} parent=11 // pred_check_branch
          %178 = sbr.rel (%p176) target = $region24
        $region23: #{tpu_custom_call.1} parent=11 // pred_region
          _
        $region24: #{tpu_custom_call.1} parent=11 // pred_fallthru
          _
      $region12: #{tpu_custom_call.1} parent=5 // pred_fallthru
        _
      %p179 = scmp.lt.s32.totalorder %s14, 2
      // Predicated region
      $region25: #{tpu_custom_call.1} parent=5 // pred_check
        %p180 = pneg %p179
      $region26: #{tpu_custom_call.1} parent=5 // pred_check_branch
        %182 = sbr.rel (%p180) target = $region28
      $region27: #{tpu_custom_call.1} parent=5 // pred_region
        // Predicated region
        $region29: #{tpu_custom_call.1} parent=27 // pred_check
          %p183 = pneg %p34
        $region30: #{tpu_custom_call.1} parent=27 // pred_check_branch
          %185 = sbr.rel (%p183) target = $region32
        $region31: #{tpu_custom_call.1} parent=27 // pred_region
          %s186 = sand.u32 %s24, 1
          %s187 = sand.u32 %s24, 1
          %s188 = smul.addr %s187, 64
          %s189 = scalar_lea.vmem [#allocation2], %s188
          %s190 = smul.u32 8, %s14
          %s191 = smul.addr %s190, 2
          %s192 = smul.addr %s191, 8
          %s193 = scalar_lea.vmem %s0, %s192
          // Predicated region
          $region33: #{tpu_custom_call.1} parent=31 // pred_check
            _
          $region34: #{tpu_custom_call.1} parent=31 // pred_check_branch
            %195 = sbr.rel (0) target = $region36
          $region35: #{tpu_custom_call.1} parent=31 // pred_region
            // Predicated region
            $region37: #{tpu_custom_call.1} parent=35 // pred_check
              _
            $region38: #{tpu_custom_call.1} parent=35 // pred_check_branch
              %197 = sbr.rel (0) target = $region40
            $region39: #{tpu_custom_call.1} parent=35 // pred_region
              // Predicated region
              $region52: #{tpu_custom_call.1} parent=39 // pred_check
                _
              $region53: #{tpu_custom_call.1} parent=39 // pred_check_branch
                %227 = sbr.rel (0) target = $region55
              $region54: #{tpu_custom_call.1} parent=39 // pred_region
                loop: start=0, step=1, limit=1
                $region56: #{tpu_custom_call.1} parent=54 // loop_pre_header
                  _
                $region57: #{tpu_custom_call.1} parent=54 // loop_header
                  %s229 = sphi 0, %s233
                  %p230 = scmp.ge.s32.totalorder %s229, 1
                  %s234 = sphi %s193, %s193
                  %s235 = sphi %s189, %s189
                $region58: #{tpu_custom_call.1} parent=54 // loop_header_branch
                  %232 = sbr.rel (%p230) target = $region62
                $region59: #{tpu_custom_call.1} parent=54 // loop_body
                  %v236 = vld [vmem:[%s234] sm:$0xff]
                  %237 = vst [vmem:[%s235] sm:$0xff] %v236
                  %v238 = vld [vmem:[%s234 + $0x10] sm:$0xff]
                  %239 = vst [vmem:[%s235 + $0x8] sm:$0xff] %v238
                  %v240 = vld [vmem:[%s234 + $0x20] sm:$0xff]
                  %241 = vst [vmem:[%s235 + $0x10] sm:$0xff] %v240
                  %v242 = vld [vmem:[%s234 + $0x30] sm:$0xff]
                  %243 = vst [vmem:[%s235 + $0x18] sm:$0xff] %v242
                  %v244 = vld [vmem:[%s234 + $0x40] sm:$0xff]
                  %245 = vst [vmem:[%s235 + $0x20] sm:$0xff] %v244
                  %v246 = vld [vmem:[%s234 + $0x50] sm:$0xff]
                  %247 = vst [vmem:[%s235 + $0x28] sm:$0xff] %v246
                  %v248 = vld [vmem:[%s234 + $0x60] sm:$0xff]
                  %249 = vst [vmem:[%s235 + $0x30] sm:$0xff] %v248
                  %v250 = vld [vmem:[%s234 + $0x70] sm:$0xff]
                  %251 = vst [vmem:[%s235 + $0x38] sm:$0xff] %v250
                $region60: #{tpu_custom_call.1} parent=54 // loop_footer
                  %s233 = sadd.s32 1, %s229
                $region61: #{tpu_custom_call.1} parent=54 // loop_footer_branch
                  %228 = sbr.rel target = $region57
                $region62: #{tpu_custom_call.1} parent=54 // loop_exit
                  _
              $region55: #{tpu_custom_call.1} parent=39 // pred_fallthru
                _
              // Predicated region
              $region63: #{tpu_custom_call.1} parent=39 // pred_check
                _
              $region64: #{tpu_custom_call.1} parent=39 // pred_check_branch
                %253 = sbr.rel target = $region66
              $region65: #{tpu_custom_call.1} parent=39 // pred_region
                _
              $region66: #{tpu_custom_call.1} parent=39 // pred_fallthru
                _
            $region40: #{tpu_custom_call.1} parent=35 // pred_fallthru
              _
            // Predicated region
            $region41: #{tpu_custom_call.1} parent=35 // pred_check
              _
            $region42: #{tpu_custom_call.1} parent=35 // pred_check_branch
              %199 = sbr.rel target = $region44
            $region43: #{tpu_custom_call.1} parent=35 // pred_region
              %s201 = ssub.s32 256, 1
              loop: start=0, step=1, limit=1
              $region45: #{tpu_custom_call.1} parent=43 // loop_pre_header
                _
              $region46: #{tpu_custom_call.1} parent=43 // loop_header
                %s203 = sphi 0, %s207
                %p204 = scmp.ge.s32.totalorder %s203, 1
                %s208 = sphi %s193, %s193
                %s209 = sphi %s189, %s189
              $region47: #{tpu_custom_call.1} parent=43 // loop_header_branch
                %206 = sbr.rel (%p204) target = $region51
              $region48: #{tpu_custom_call.1} parent=43 // loop_body
                %v210 = vld [vmem:[%s208] sm:%s201]
                %211 = vst [vmem:[%s209] sm:%s201] %v210
                %v212 = vld [vmem:[%s208 + $0x10] sm:%s201]
                %213 = vst [vmem:[%s209 + $0x8] sm:%s201] %v212
                %v214 = vld [vmem:[%s208 + $0x20] sm:%s201]
                %215 = vst [vmem:[%s209 + $0x10] sm:%s201] %v214
                %v216 = vld [vmem:[%s208 + $0x30] sm:%s201]
                %217 = vst [vmem:[%s209 + $0x18] sm:%s201] %v216
                %v218 = vld [vmem:[%s208 + $0x40] sm:%s201]
                %219 = vst [vmem:[%s209 + $0x20] sm:%s201] %v218
                %v220 = vld [vmem:[%s208 + $0x50] sm:%s201]
                %221 = vst [vmem:[%s209 + $0x28] sm:%s201] %v220
                %v222 = vld [vmem:[%s208 + $0x60] sm:%s201]
                %223 = vst [vmem:[%s209 + $0x30] sm:%s201] %v222
                %v224 = vld [vmem:[%s208 + $0x70] sm:%s201]
                %225 = vst [vmem:[%s209 + $0x38] sm:%s201] %v224
              $region49: #{tpu_custom_call.1} parent=43 // loop_footer
                %s207 = sadd.s32 1, %s203
              $region50: #{tpu_custom_call.1} parent=43 // loop_footer_branch
                %202 = sbr.rel target = $region46
              $region51: #{tpu_custom_call.1} parent=43 // loop_exit
                _
            $region44: #{tpu_custom_call.1} parent=35 // pred_fallthru
              _
          $region36: #{tpu_custom_call.1} parent=31 // pred_fallthru
            _
          %254 = vnop
        $region32: #{tpu_custom_call.1} parent=27 // pred_fallthru
          _
        // Predicated region
        $region67: #{tpu_custom_call.1} parent=27 // pred_check
          %p255 = pneg %p60
        $region68: #{tpu_custom_call.1} parent=27 // pred_check_branch
          %257 = sbr.rel (%p255) target = $region70
        $region69: #{tpu_custom_call.1} parent=27 // pred_region
          %s258 = sand.u32 %s50, 1
          %s259 = sand.u32 %s50, 1
          %s260 = smul.addr %s259, 64
          %s261 = scalar_lea.vmem [#allocation3], %s260
          %s262 = smul.u32 8, %s14
          %s263 = smul.addr %s262, 2
          %s264 = sadd.s32 1, %s263
          %s265 = smul.addr %s264, 8
          %s266 = scalar_lea.vmem %s1, %s265
          // Predicated region
          $region71: #{tpu_custom_call.1} parent=69 // pred_check
            _
          $region72: #{tpu_custom_call.1} parent=69 // pred_check_branch
            %268 = sbr.rel (0) target = $region74
          $region73: #{tpu_custom_call.1} parent=69 // pred_region
            // Predicated region
            $region75: #{tpu_custom_call.1} parent=73 // pred_check
              _
            $region76: #{tpu_custom_call.1} parent=73 // pred_check_branch
              %270 = sbr.rel (0) target = $region78
            $region77: #{tpu_custom_call.1} parent=73 // pred_region
              // Predicated region
              $region90: #{tpu_custom_call.1} parent=77 // pred_check
                _
              $region91: #{tpu_custom_call.1} parent=77 // pred_check_branch
                %300 = sbr.rel (0) target = $region93
              $region92: #{tpu_custom_call.1} parent=77 // pred_region
                loop: start=0, step=1, limit=1
                $region94: #{tpu_custom_call.1} parent=92 // loop_pre_header
                  _
                $region95: #{tpu_custom_call.1} parent=92 // loop_header
                  %s302 = sphi 0, %s306
                  %p303 = scmp.ge.s32.totalorder %s302, 1
                  %s307 = sphi %s266, %s266
                  %s308 = sphi %s261, %s261
                $region96: #{tpu_custom_call.1} parent=92 // loop_header_branch
                  %305 = sbr.rel (%p303) target = $region100
                $region97: #{tpu_custom_call.1} parent=92 // loop_body
                  %v309 = vld [vmem:[%s307] sm:$0xff]
                  %310 = vst [vmem:[%s308] sm:$0xff] %v309
                  %v311 = vld [vmem:[%s307 + $0x10] sm:$0xff]
                  %312 = vst [vmem:[%s308 + $0x8] sm:$0xff] %v311
                  %v313 = vld [vmem:[%s307 + $0x20] sm:$0xff]
                  %314 = vst [vmem:[%s308 + $0x10] sm:$0xff] %v313
                  %v315 = vld [vmem:[%s307 + $0x30] sm:$0xff]
                  %316 = vst [vmem:[%s308 + $0x18] sm:$0xff] %v315
                  %v317 = vld [vmem:[%s307 + $0x40] sm:$0xff]
                  %318 = vst [vmem:[%s308 + $0x20] sm:$0xff] %v317
                  %v319 = vld [vmem:[%s307 + $0x50] sm:$0xff]
                  %320 = vst [vmem:[%s308 + $0x28] sm:$0xff] %v319
                  %v321 = vld [vmem:[%s307 + $0x60] sm:$0xff]
                  %322 = vst [vmem:[%s308 + $0x30] sm:$0xff] %v321
                  %v323 = vld [vmem:[%s307 + $0x70] sm:$0xff]
                  %324 = vst [vmem:[%s308 + $0x38] sm:$0xff] %v323
                $region98: #{tpu_custom_call.1} parent=92 // loop_footer
                  %s306 = sadd.s32 1, %s302
                $region99: #{tpu_custom_call.1} parent=92 // loop_footer_branch
                  %301 = sbr.rel target = $region95
                $region100: #{tpu_custom_call.1} parent=92 // loop_exit
                  _
              $region93: #{tpu_custom_call.1} parent=77 // pred_fallthru
                _
              // Predicated region
              $region101: #{tpu_custom_call.1} parent=77 // pred_check
                _
              $region102: #{tpu_custom_call.1} parent=77 // pred_check_branch
                %326 = sbr.rel target = $region104
              $region103: #{tpu_custom_call.1} parent=77 // pred_region
                _
              $region104: #{tpu_custom_call.1} parent=77 // pred_fallthru
                _
            $region78: #{tpu_custom_call.1} parent=73 // pred_fallthru
              _
            // Predicated region
            $region79: #{tpu_custom_call.1} parent=73 // pred_check
              _
            $region80: #{tpu_custom_call.1} parent=73 // pred_check_branch
              %272 = sbr.rel target = $region82
            $region81: #{tpu_custom_call.1} parent=73 // pred_region
              %s274 = ssub.s32 256, 1
              loop: start=0, step=1, limit=1
              $region83: #{tpu_custom_call.1} parent=81 // loop_pre_header
                _
              $region84: #{tpu_custom_call.1} parent=81 // loop_header
                %s276 = sphi 0, %s280
                %p277 = scmp.ge.s32.totalorder %s276, 1
                %s281 = sphi %s266, %s266
                %s282 = sphi %s261, %s261
              $region85: #{tpu_custom_call.1} parent=81 // loop_header_branch
                %279 = sbr.rel (%p277) target = $region89
              $region86: #{tpu_custom_call.1} parent=81 // loop_body
                %v283 = vld [vmem:[%s281] sm:%s274]
                %284 = vst [vmem:[%s282] sm:%s274] %v283
                %v285 = vld [vmem:[%s281 + $0x10] sm:%s274]
                %286 = vst [vmem:[%s282 + $0x8] sm:%s274] %v285
                %v287 = vld [vmem:[%s281 + $0x20] sm:%s274]
                %288 = vst [vmem:[%s282 + $0x10] sm:%s274] %v287
                %v289 = vld [vmem:[%s281 + $0x30] sm:%s274]
                %290 = vst [vmem:[%s282 + $0x18] sm:%s274] %v289
                %v291 = vld [vmem:[%s281 + $0x40] sm:%s274]
                %292 = vst [vmem:[%s282 + $0x20] sm:%s274] %v291
                %v293 = vld [vmem:[%s281 + $0x50] sm:%s274]
                %294 = vst [vmem:[%s282 + $0x28] sm:%s274] %v293
                %v295 = vld [vmem:[%s281 + $0x60] sm:%s274]
                %296 = vst [vmem:[%s282 + $0x30] sm:%s274] %v295
                %v297 = vld [vmem:[%s281 + $0x70] sm:%s274]
                %298 = vst [vmem:[%s282 + $0x38] sm:%s274] %v297
              $region87: #{tpu_custom_call.1} parent=81 // loop_footer
                %s280 = sadd.s32 1, %s276
              $region88: #{tpu_custom_call.1} parent=81 // loop_footer_branch
                %275 = sbr.rel target = $region84
              $region89: #{tpu_custom_call.1} parent=81 // loop_exit
                _
            $region82: #{tpu_custom_call.1} parent=73 // pred_fallthru
              _
          $region74: #{tpu_custom_call.1} parent=69 // pred_fallthru
            _
          %327 = vnop
        $region70: #{tpu_custom_call.1} parent=27 // pred_fallthru
          _
      $region28: #{tpu_custom_call.1} parent=5 // pred_fallthru
        _
      %p328 = scmp.le.s32.totalorder 1, %s14
      %p329 = scmp.lt.s32.totalorder %s14, 3
      %p330 = pnand %p328, %p329
      %p331 = pneg %p330
      // Predicated region
      $region105: #{tpu_custom_call.1} parent=5 // pred_check
        _
      $region106: #{tpu_custom_call.1} parent=5 // pred_check_branch
        %333 = sbr.rel (%p330) target = $region108
      $region107: #{tpu_custom_call.1} parent=5 // pred_region
        %s334 = ssub.s32 %s14, 1
        %s335 = sand.u32 %s27, 1
        %s336 = sand.u32 %s27, 1
        %s337 = smul.addr %s336, 64
        %s338 = scalar_lea.vmem [#allocation2], %s337
        // Predicated region
        $region109: #{tpu_custom_call.1} parent=107 // pred_check
          %p339 = pneg %p40
        $region110: #{tpu_custom_call.1} parent=107 // pred_check_branch
          %341 = sbr.rel (%p339) target = $region112
        $region111: #{tpu_custom_call.1} parent=107 // pred_region
          _
        $region112: #{tpu_custom_call.1} parent=107 // pred_fallthru
          _
        %s342 = sand.u32 %s53, 1
        %s343 = sand.u32 %s53, 1
        %s344 = smul.addr %s343, 64
        %s345 = scalar_lea.vmem [#allocation3], %s344
        // Predicated region
        $region113: #{tpu_custom_call.1} parent=107 // pred_check
          %p346 = pneg %p66
        $region114: #{tpu_custom_call.1} parent=107 // pred_check_branch
          %348 = sbr.rel (%p346) target = $region116
        $region115: #{tpu_custom_call.1} parent=107 // pred_region
          _
        $region116: #{tpu_custom_call.1} parent=107 // pred_fallthru
          _
        %s349 = sand.u32 %s27, 1
        %s350 = sand.u32 %s27, 1
        %s351 = smul.addr %s350, 64
        %s352 = scalar_lea.vmem [#allocation2], %s351
        %p353 = pneg %p40
        %p354 = pneg %p37
        %s355 = sand.u32 %s53, 1
        %s356 = sand.u32 %s53, 1
        %s357 = smul.addr %s356, 64
        %s358 = scalar_lea.vmem [#allocation3], %s357
        %p359 = pneg %p66
        %p360 = pneg %p63
        %p361 = pneg %p87
        %p362 = pneg %p84
        %p363 = pneg %p108
        %p364 = pneg %p105
        %p365 = pneg %p129
        %p366 = pneg %p126
        %p367 = pneg %p155
        %p368 = pneg %p152
        %s369 = sand.u32 %s142, 1
        %s370 = scalar_lea.sflag [#allocation5], %s369
        %s371 = sand.u32 %s142, 1
        %s372 = smul.addr %s371, 64
        %s373 = scalar_lea.vmem [#allocation4], %s372
        %s374 = smul.u32 8, %s19
        %s375 = smul.u32 8, %s19
        %s376 = smul.u32 8, %s19
        %v378 = vld [vmem:[%s338] sm:$0xff]
        %v379 = vld [vmem:[%s338 + $0x8] sm:$0xff]
        %v380 = vld [vmem:[%s338 + $0x10] sm:$0xff]
        %v381 = vld [vmem:[%s338 + $0x18] sm:$0xff]
        %v382 = vld [vmem:[%s338 + $0x20] sm:$0xff]
        %v383 = vld [vmem:[%s338 + $0x28] sm:$0xff]
        %v384 = vld [vmem:[%s338 + $0x30] sm:$0xff]
        %v385 = vld [vmem:[%s338 + $0x38] sm:$0xff]
        %v386 = vld [vmem:[%s345] sm:$0xff]
        %v387 = vld [vmem:[%s345 + $0x8] sm:$0xff]
        %v388 = vld [vmem:[%s345 + $0x10] sm:$0xff]
        %v389 = vld [vmem:[%s345 + $0x18] sm:$0xff]
        %v390 = vld [vmem:[%s345 + $0x20] sm:$0xff]
        %v391 = vld [vmem:[%s345 + $0x28] sm:$0xff]
        %v392 = vld [vmem:[%s345 + $0x30] sm:$0xff]
        %v393 = vld [vmem:[%s345 + $0x38] sm:$0xff]
        %vm394 = vcmask 64512
        %v395 = vsel %vm394, %v378, 0.0
        %396 = vadd.xlane.f32.xlu0 %v395
        %v397 = vpop.xlane.xlu0 %396
        %v398 = vsel %vm394, %v379, 0.0
        %399 = vadd.xlane.f32.xlu0 %v398
        %v400 = vpop.xlane.xlu0 %399
        %v401 = vsel %vm394, %v380, 0.0
        %402 = vadd.xlane.f32.xlu0 %v401
        %v403 = vpop.xlane.xlu0 %402
        %v404 = vsel %vm394, %v381, 0.0
        %405 = vadd.xlane.f32.xlu0 %v404
        %v406 = vpop.xlane.xlu0 %405
        %v407 = vsel %vm394, %v382, 0.0
        %408 = vadd.xlane.f32.xlu0 %v407
        %v409 = vpop.xlane.xlu0 %408
        %v410 = vsel %vm394, %v383, 0.0
        %411 = vadd.xlane.f32.xlu0 %v410
        %v412 = vpop.xlane.xlu0 %411
        %v413 = vsel %vm394, %v384, 0.0
        %414 = vadd.xlane.f32.xlu0 %v413
        %v415 = vpop.xlane.xlu0 %414
        %v416 = vsel %vm394, %v385, 0.0
        %417 = vadd.xlane.f32.xlu0 %v416
        %v418 = vpop.xlane.xlu0 %417
        %v419 = vsel %vm394, %v386, 0.0
        %420 = vadd.xlane.f32.xlu0 %v419
        %v421 = vpop.xlane.xlu0 %420
        %v422 = vsel %vm394, %v387, 0.0
        %423 = vadd.xlane.f32.xlu0 %v422
        %v424 = vpop.xlane.xlu0 %423
        %v425 = vsel %vm394, %v388, 0.0
        %426 = vadd.xlane.f32.xlu0 %v425
        %v427 = vpop.xlane.xlu0 %426
        %v428 = vsel %vm394, %v389, 0.0
        %429 = vadd.xlane.f32.xlu0 %v428
        %v430 = vpop.xlane.xlu0 %429
        %v431 = vsel %vm394, %v390, 0.0
        %432 = vadd.xlane.f32.xlu0 %v431
        %v433 = vpop.xlane.xlu0 %432
        %v434 = vsel %vm394, %v391, 0.0
        %435 = vadd.xlane.f32.xlu0 %v434
        %v436 = vpop.xlane.xlu0 %435
        %v437 = vsel %vm394, %v392, 0.0
        %438 = vadd.xlane.f32.xlu0 %v437
        %v439 = vpop.xlane.xlu0 %438
        %v440 = vsel %vm394, %v393, 0.0
        %441 = vadd.xlane.f32.xlu0 %v440
        %v442 = vpop.xlane.xlu0 %441
        %v443 = vadd.f32 %v397, %v421
        %v444 = vadd.f32 %v400, %v424
        %v445 = vadd.f32 %v403, %v427
        %v446 = vadd.f32 %v406, %v430
        %v447 = vadd.f32 %v409, %v433
        %v448 = vadd.f32 %v412, %v436
        %v449 = vadd.f32 %v415, %v439
        %v450 = vadd.f32 %v418, %v442
        %v451 = vmul.f32 %v443, 0.0625
        %v452 = vmul.f32 %v444, 0.0625
        %v453 = vmul.f32 %v445, 0.0625
        %v454 = vmul.f32 %v446, 0.0625
        %v455 = vmul.f32 %v447, 0.0625
        %v456 = vmul.f32 %v448, 0.0625
        %v457 = vmul.f32 %v449, 0.0625
        %v458 = vmul.f32 %v450, 0.0625
        %v459 = vsub.f32 %v378, %v451
        %v460 = vsub.f32 %v379, %v452
        %v461 = vsub.f32 %v380, %v453
        %v462 = vsub.f32 %v381, %v454
        %v463 = vsub.f32 %v382, %v455
        %v464 = vsub.f32 %v383, %v456
        %v465 = vsub.f32 %v384, %v457
        %v466 = vsub.f32 %v385, %v458
        %v467 = vsub.f32 %v386, %v451
        %v468 = vsub.f32 %v387, %v452
        %v469 = vsub.f32 %v388, %v453
        %v470 = vsub.f32 %v389, %v454
        %v471 = vsub.f32 %v390, %v455
        %v472 = vsub.f32 %v391, %v456
        %v473 = vsub.f32 %v392, %v457
        %v474 = vsub.f32 %v393, %v458
        %v475 = vmul.f32 %v459, %v459
        %v476 = vmul.f32 %v460, %v460
        %v477 = vmul.f32 %v461, %v461
        %v478 = vmul.f32 %v462, %v462
        %v479 = vmul.f32 %v463, %v463
        %v480 = vmul.f32 %v464, %v464
        %v481 = vmul.f32 %v465, %v465
        %v482 = vmul.f32 %v466, %v466
        %v483 = vsel %vm394, %v475, 0.0
        %484 = vadd.xlane.f32.xlu0 %v483
        %v485 = vpop.xlane.xlu0 %484
        %v486 = vsel %vm394, %v476, 0.0
        %487 = vadd.xlane.f32.xlu0 %v486
        %v488 = vpop.xlane.xlu0 %487
        %v489 = vsel %vm394, %v477, 0.0
        %490 = vadd.xlane.f32.xlu0 %v489
        %v491 = vpop.xlane.xlu0 %490
        %v492 = vsel %vm394, %v478, 0.0
        %493 = vadd.xlane.f32.xlu0 %v492
        %v494 = vpop.xlane.xlu0 %493
        %v495 = vsel %vm394, %v479, 0.0
        %496 = vadd.xlane.f32.xlu0 %v495
        %v497 = vpop.xlane.xlu0 %496
        %v498 = vsel %vm394, %v480, 0.0
        %499 = vadd.xlane.f32.xlu0 %v498
        %v500 = vpop.xlane.xlu0 %499
        %v501 = vsel %vm394, %v481, 0.0
        %502 = vadd.xlane.f32.xlu0 %v501
        %v503 = vpop.xlane.xlu0 %502
        %v504 = vsel %vm394, %v482, 0.0
        %505 = vadd.xlane.f32.xlu0 %v504
        %v506 = vpop.xlane.xlu0 %505
        %v507 = vmul.f32 %v467, %v467
        %v508 = vmul.f32 %v468, %v468
        %v509 = vmul.f32 %v469, %v469
        %v510 = vmul.f32 %v470, %v470
        %v511 = vmul.f32 %v471, %v471
        %v512 = vmul.f32 %v472, %v472
        %v513 = vmul.f32 %v473, %v473
        %v514 = vmul.f32 %v474, %v474
        %v515 = vsel %vm394, %v507, 0.0
        %516 = vadd.xlane.f32.xlu0 %v515
        %v517 = vpop.xlane.xlu0 %516
        %v518 = vsel %vm394, %v508, 0.0
        %519 = vadd.xlane.f32.xlu0 %v518
        %v520 = vpop.xlane.xlu0 %519
        %v521 = vsel %vm394, %v509, 0.0
        %522 = vadd.xlane.f32.xlu0 %v521
        %v523 = vpop.xlane.xlu0 %522
        %v524 = vsel %vm394, %v510, 0.0
        %525 = vadd.xlane.f32.xlu0 %v524
        %v526 = vpop.xlane.xlu0 %525
        %v527 = vsel %vm394, %v511, 0.0
        %528 = vadd.xlane.f32.xlu0 %v527
        %v529 = vpop.xlane.xlu0 %528
        %v530 = vsel %vm394, %v512, 0.0
        %531 = vadd.xlane.f32.xlu0 %v530
        %v532 = vpop.xlane.xlu0 %531
        %v533 = vsel %vm394, %v513, 0.0
        %534 = vadd.xlane.f32.xlu0 %v533
        %v535 = vpop.xlane.xlu0 %534
        %v536 = vsel %vm394, %v514, 0.0
        %537 = vadd.xlane.f32.xlu0 %v536
        %v538 = vpop.xlane.xlu0 %537
        %v539 = vadd.f32 %v485, %v517
        %v540 = vadd.f32 %v488, %v520
        %v541 = vadd.f32 %v491, %v523
        %v542 = vadd.f32 %v494, %v526
        %v543 = vadd.f32 %v497, %v529
        %v544 = vadd.f32 %v500, %v532
        %v545 = vadd.f32 %v503, %v535
        %v546 = vadd.f32 %v506, %v538
        %v547 = vmul.f32 %v539, 0.0625
        %v548 = vmul.f32 %v540, 0.0625
        %v549 = vmul.f32 %v541, 0.0625
        %v550 = vmul.f32 %v542, 0.0625
        %v551 = vmul.f32 %v543, 0.0625
        %v552 = vmul.f32 %v544, 0.0625
        %v553 = vmul.f32 %v545, 0.0625
        %v554 = vmul.f32 %v546, 0.0625
        %v555 = vadd.f32 %v547, 1e-05
        %v556 = vadd.f32 %v548, 1e-05
        %v557 = vadd.f32 %v549, 1e-05
        %v558 = vadd.f32 %v550, 1e-05
        %v559 = vadd.f32 %v551, 1e-05
        %v560 = vadd.f32 %v552, 1e-05
        %v561 = vadd.f32 %v553, 1e-05
        %v562 = vadd.f32 %v554, 1e-05
        %v563 = vrsqrt.pop %v555
        %v564 = vmul.f32 %v563, %v555
        %v565 = vmul.f32 %v564, %v563
        %v566 = vmul.f32 0.5, %v565
        %v567 = vsub.f32 1.5, %v566
        %v568 = vmul.f32 %v563, %v567
        %vm569 = vweird.f32 %v555
        %vm570 = vweird.f32 %v563
        %vm571 = vmor %vm569, %vm570
        %v572 = vsel %vm571, %v563, %v568
        %v573 = vrsqrt.pop %v556
        %v574 = vmul.f32 %v573, %v556
        %v575 = vmul.f32 %v574, %v573
        %v576 = vmul.f32 0.5, %v575
        %v577 = vsub.f32 1.5, %v576
        %v578 = vmul.f32 %v573, %v577
        %vm579 = vweird.f32 %v556
        %vm580 = vweird.f32 %v573
        %vm581 = vmor %vm579, %vm580
        %v582 = vsel %vm581, %v573, %v578
        %v583 = vrsqrt.pop %v557
        %v584 = vmul.f32 %v583, %v557
        %v585 = vmul.f32 %v584, %v583
        %v586 = vmul.f32 0.5, %v585
        %v587 = vsub.f32 1.5, %v586
        %v588 = vmul.f32 %v583, %v587
        %vm589 = vweird.f32 %v557
        %vm590 = vweird.f32 %v583
        %vm591 = vmor %vm589, %vm590
        %v592 = vsel %vm591, %v583, %v588
        %v593 = vrsqrt.pop %v558
        %v594 = vmul.f32 %v593, %v558
        %v595 = vmul.f32 %v594, %v593
        %v596 = vmul.f32 0.5, %v595
        %v597 = vsub.f32 1.5, %v596
        %v598 = vmul.f32 %v593, %v597
        %vm599 = vweird.f32 %v558
        %vm600 = vweird.f32 %v593
        %vm601 = vmor %vm599, %vm600
        %v602 = vsel %vm601, %v593, %v598
        %v603 = vrsqrt.pop %v559
        %v604 = vmul.f32 %v603, %v559
        %v605 = vmul.f32 %v604, %v603
        %v606 = vmul.f32 0.5, %v605
        %v607 = vsub.f32 1.5, %v606
        %v608 = vmul.f32 %v603, %v607
        %vm609 = vweird.f32 %v559
        %vm610 = vweird.f32 %v603
        %vm611 = vmor %vm609, %vm610
        %v612 = vsel %vm611, %v603, %v608
        %v613 = vrsqrt.pop %v560
        %v614 = vmul.f32 %v613, %v560
        %v615 = vmul.f32 %v614, %v613
        %v616 = vmul.f32 0.5, %v615
        %v617 = vsub.f32 1.5, %v616
        %v618 = vmul.f32 %v613, %v617
        %vm619 = vweird.f32 %v560
        %vm620 = vweird.f32 %v613
        %vm621 = vmor %vm619, %vm620
        %v622 = vsel %vm621, %v613, %v618
        %v623 = vrsqrt.pop %v561
        %v624 = vmul.f32 %v623, %v561
        %v625 = vmul.f32 %v624, %v623
        %v626 = vmul.f32 0.5, %v625
        %v627 = vsub.f32 1.5, %v626
        %v628 = vmul.f32 %v623, %v627
        %vm629 = vweird.f32 %v561
        %vm630 = vweird.f32 %v623
        %vm631 = vmor %vm629, %vm630
        %v632 = vsel %vm631, %v623, %v628
        %v633 = vrsqrt.pop %v562
        %v634 = vmul.f32 %v633, %v562
        %v635 = vmul.f32 %v634, %v633
        %v636 = vmul.f32 0.5, %v635
        %v637 = vsub.f32 1.5, %v636
        %v638 = vmul.f32 %v633, %v637
        %vm639 = vweird.f32 %v562
        %vm640 = vweird.f32 %v633
        %vm641 = vmor %vm639, %vm640
        %v642 = vsel %vm641, %v633, %v638
        %v643 = vmul.f32 %v459, %v572
        %v644 = vmul.f32 %v460, %v582
        %v645 = vmul.f32 %v461, %v592
        %v646 = vmul.f32 %v462, %v602
        %v647 = vmul.f32 %v463, %v612
        %v648 = vmul.f32 %v464, %v622
        %v649 = vmul.f32 %v465, %v632
        %v650 = vmul.f32 %v466, %v642
        %v651 = vpack.c.bf16 %v644, %v643
        %v652 = vpack.c.bf16 %v646, %v645
        %v653 = vpack.c.bf16 %v648, %v647
        %v654 = vpack.c.bf16 %v650, %v649
        %v655 = vmul.f32 %v467, %v572
        %v656 = vmul.f32 %v468, %v582
        %v657 = vmul.f32 %v469, %v592
        %v658 = vmul.f32 %v470, %v602
        %v659 = vmul.f32 %v471, %v612
        %v660 = vmul.f32 %v472, %v622
        %v661 = vmul.f32 %v473, %v632
        %v662 = vmul.f32 %v474, %v642
        %v663 = vpack.c.bf16 %v656, %v655
        %v664 = vpack.c.bf16 %v658, %v657
        %v665 = vpack.c.bf16 %v660, %v659
        %v666 = vpack.c.bf16 %v662, %v661
        %v667 = vld [vmem:[%s2] sm:$0xf]
        %v668 = vld [vmem:[%s3] sm:$0xf]
        %v670 = vsel %vm394, %v663, 0
        %v673 = vsel %vm394, %v664, 0
        %v676 = vsel %vm394, %v665, 0
        %v679 = vsel %vm394, %v666, 0
        %vm681 = vcmask 1043456
        %v683 = vsel %vm681, %v668, 0
        %685 = vmatpush.bf16.msra.mxu0 0
        %686 = vmatpush.bf16.msra.mxu0 0
        %687 = vmatpush.bf16.msra.mxu0 0
        %688 = vmatpush.bf16.msra.mxu0 0
        %689 = vmatpush.bf16.msra.mxu0 0
        %690 = vmatpush.bf16.msra.mxu0 0
        %691 = vmatpush.bf16.msra.mxu0 0
        %692 = vmatpush.bf16.msra.mxu0 %v683
        %693 = vmatmul.bf16.gmra.mxu0 %v670
        %v694 = vpop.f32.mrf.mxu0
        %v695 = vadd.f32 0.0, %v694
        %v696 = vpop.f32.mrf.mxu0
        %v697 = vadd.f32 0.0, %v696
        %698 = vmatmul.bf16.gmra.mxu0 %v673
        %v699 = vpop.f32.mrf.mxu0
        %v700 = vadd.f32 0.0, %v699
        %v701 = vpop.f32.mrf.mxu0
        %v702 = vadd.f32 0.0, %v701
        %703 = vmatmul.bf16.gmra.mxu0 %v676
        %v704 = vpop.f32.mrf.mxu0
        %v705 = vadd.f32 0.0, %v704
        %v706 = vpop.f32.mrf.mxu0
        %v707 = vadd.f32 0.0, %v706
        %708 = vmatmul.bf16.gmra.mxu0 %v679
        %v709 = vpop.f32.mrf.mxu0
        %v710 = vadd.f32 0.0, %v709
        %v711 = vpop.f32.mrf.mxu0
        %v712 = vadd.f32 0.0, %v711
        %713 = vdwg.mxu0
        %v715 = vsel %vm394, %v651, 0
        %v718 = vsel %vm394, %v652, 0
        %v721 = vsel %vm394, %v653, 0
        %v724 = vsel %vm394, %v654, 0
        %v727 = vsel %vm681, %v667, 0
        %729 = vmatpush.bf16.msra.mxu0 0
        %730 = vmatpush.bf16.msra.mxu0 0
        %731 = vmatpush.bf16.msra.mxu0 0
        %732 = vmatpush.bf16.msra.mxu0 0
        %733 = vmatpush.bf16.msra.mxu0 0
        %734 = vmatpush.bf16.msra.mxu0 0
        %735 = vmatpush.bf16.msra.mxu0 0
        %736 = vmatpush.bf16.msra.mxu0 %v727
        %737 = vmatmul.bf16.gmra.mxu0 %v715
        %v738 = vpop.f32.mrf.mxu0
        %v739 = vadd.f32 %v695, %v738
        %v740 = vpop.f32.mrf.mxu0
        %v741 = vadd.f32 %v697, %v740
        %742 = vmatmul.bf16.gmra.mxu0 %v718
        %v743 = vpop.f32.mrf.mxu0
        %v744 = vadd.f32 %v700, %v743
        %v745 = vpop.f32.mrf.mxu0
        %v746 = vadd.f32 %v702, %v745
        %747 = vmatmul.bf16.gmra.mxu0 %v721
        %v748 = vpop.f32.mrf.mxu0
        %v749 = vadd.f32 %v705, %v748
        %v750 = vpop.f32.mrf.mxu0
        %v751 = vadd.f32 %v707, %v750
        %752 = vmatmul.bf16.gmra.mxu0 %v724
        %v753 = vpop.f32.mrf.mxu0
        %v754 = vadd.f32 %v710, %v753
        %v755 = vpop.f32.mrf.mxu0
        %v756 = vadd.f32 %v712, %v755
        %757 = vdwg.mxu0
        %v758 = vld [vmem:[%s4] sm:$0x1]
        %v760 = vperm.slane %v758, 0
        %v762 = vadd.f32 %v739, %v760
        %v763 = vadd.f32 %v741, %v760
        %v764 = vadd.f32 %v744, %v760
        %v765 = vadd.f32 %v746, %v760
        %v766 = vadd.f32 %v749, %v760
        %v767 = vadd.f32 %v751, %v760
        %v768 = vadd.f32 %v754, %v760
        %v769 = vadd.f32 %v756, %v760
        %770 = vst [vmem:[%s373] sm:$0xff] %v762
        %771 = vst [vmem:[%s373 + $0x8] sm:$0xff] %v763
        %772 = vst [vmem:[%s373 + $0x10] sm:$0xff] %v764
        %773 = vst [vmem:[%s373 + $0x18] sm:$0xff] %v765
        %774 = vst [vmem:[%s373 + $0x20] sm:$0xff] %v766
        %775 = vst [vmem:[%s373 + $0x28] sm:$0xff] %v767
        %776 = vst [vmem:[%s373 + $0x30] sm:$0xff] %v768
        %777 = vst [vmem:[%s373 + $0x38] sm:$0xff] %v769
        %s778 = sand.u32 %s142, 1
        %s779 = scalar_lea.sflag [#allocation5], %s778
        %s780 = sand.u32 %s142, 1
        %s781 = smul.addr %s780, 64
        %s782 = scalar_lea.vmem [#allocation4], %s781
        // Predicated region
        $region117: #{tpu_custom_call.1} parent=107 // pred_check
          %p783 = pneg %p152
        $region118: #{tpu_custom_call.1} parent=107 // pred_check_branch
          %785 = sbr.rel (%p783) target = $region120
        $region119: #{tpu_custom_call.1} parent=107 // pred_region
          %s786 = smul.u32 8, %s19
          %788 = vsyncadd %s779, 0
          %s789 = smul.addr %s786, 8
          %s790 = scalar_lea.hbm %s5, %s789
          %s791 = sshll.u32 %s782, 4
          %s792 = int_to_ptr.vmem [resolvable:$true] %s791
          %s793 = sshll.u32 %s790, 4
          %s794 = int_to_ptr.hbm [resolvable:$true] %s793
          %799 = dma.vmem_to_hbm [thread:$0]  %s792, 1024, %s794, %s779, 128, 128, 8
        $region120: #{tpu_custom_call.1} parent=107 // pred_fallthru
          _
      $region108: #{tpu_custom_call.1} parent=5 // pred_fallthru
        _
      %p800 = scmp.le.s32.totalorder 2, %s14
      // Predicated region
      $region121: #{tpu_custom_call.1} parent=5 // pred_check
        %p801 = pneg %p800
      $region122: #{tpu_custom_call.1} parent=5 // pred_check_branch
        %803 = sbr.rel (%p801) target = $region124
      $region123: #{tpu_custom_call.1} parent=5 // pred_region
        %s804 = ssub.s32 %s14, 2
        // Predicated region
        $region125: #{tpu_custom_call.1} parent=123 // pred_check
          %p805 = pneg %p158
        $region126: #{tpu_custom_call.1} parent=123 // pred_check_branch
          %807 = sbr.rel (%p805) target = $region128
        $region127: #{tpu_custom_call.1} parent=123 // pred_region
          %s808 = sand.u32 %s143, 1
          %s809 = scalar_lea.sflag [#allocation5], %s808
          %s810 = sand.u32 %s143, 1
          %s811 = smul.addr %s810, 64
          %s812 = scalar_lea.vmem [#allocation4], %s811
          %814 = dma.done %s809, 1024
        $region128: #{tpu_custom_call.1} parent=123 // pred_fallthru
          _
      $region124: #{tpu_custom_call.1} parent=5 // pred_fallthru
        _
    $region6: #{tpu_custom_call.1} parent=1 // loop_footer
      %s18 = sadd.s32 1, %s14
    $region7: #{tpu_custom_call.1} parent=1 // loop_footer_branch
      %13 = sbr.rel target = $region3
    $region8: #{tpu_custom_call.1} parent=1 // loop_exit
      _
    %815 = vsyncpa [#allocation5], 1
    %s816 = scalar_lea.sflag [#allocation5], 1
    %817 = vsyncpa %s816, 1

</llo_original>
